<compile_context>
chip_gen: v5e
topology: v5e:2x2
jax: 0.10.0
libtpu: 0.0.40
codegen_flags: <defaults>
</compile_context>

<pallas_src>
import functools
import math

import jax
import jax.numpy as jnp
from jax.experimental import pallas as pl
from jax.experimental.pallas import tpu as pltpu


_MIN_CORE_SPLIT_BYTES = 2 * 1024 * 1024


def _vmem_budget_bytes():
    """(per-block element budget base in bytes, scoped vmem limit in bytes).

    Sized for the smallest-VMEM generation (v7x: 64 MiB / TensorCore): block
    <= 8 MiB keeps the ~4x double-buffered in+out working set <= ~32 MiB,
    while the explicit limit (~48 MiB) also lifts v5e's 16 MiB scoped default.
    """
    try:
        cap = int(getattr(pltpu.get_tpu_info(), "vmem_capacity_bytes"))
    except Exception:
        cap = 64 * 1024 * 1024  # v7x has the smallest per-core VMEM
    block = max(2 * 1024 * 1024, min(8 * 1024 * 1024, cap // 8))
    limit = min(cap * 3 // 4, 6 * block)
    return block, limit


def _round_up(v, m):
    return ((v + m - 1) // m) * m


def _divisors(n):
    out = []
    i = 1
    while i * i <= n:
        if n % i == 0:
            out.append(i)
            if i != n // i:
                out.append(n // i)
        i += 1
    return sorted(out)


def _tile_candidates(dim, align):
    """Legal tile sizes along one axis: divisors of `dim` that are multiples of
    `align`, plus `dim` itself (a full-extent block is always legal).  Thinned
    to ~log2(dim) entries so the tile search stays cheap at trace time."""
    cands = sorted({d for d in _divisors(dim) if d % align == 0} | {dim})
    if len(cands) <= 16:
        return cands
    thin = {cands[0], cands[-1]}
    b = 1
    while b <= cands[-1]:
        best = None
        for c in cands:
            if c <= b:
                best = c
            else:
                break
        if best is not None:
            thin.add(best)
        b *= 2
    return sorted(thin)


def _vmem_footprint_elems(block, sub):
    """Padded VMEM footprint (elements) of a 3-D block: the minor dim is laid
    out in 128-wide lanes and the second-minor in `sub`-deep sublanes."""
    return block[0] * _round_up(block[1], sub) * _round_up(block[2], 128)


def _pick_tiles(shape, perm, aligns, sub, max_elems, out_floor, in_floor):
    """Pick per-axis tile sizes for the 3-D transpose.

    Preference (lexicographic): keep the axis that becomes the OUTPUT lane
    (last) axis fat up to `out_floor` (unmasked, long vst runs), then keep the
    input lane axis above `in_floor` (>= ~2 KiB HBM read runs), then maximize
    total block size (amortizes the ~0.35 us per-grid-step overhead).  The
    budget constraint uses the *padded* footprint of both views.  Returns None
    if no candidate block fits."""
    out_lane_axis = perm[2]          # input axis that becomes the output lane
    in_lane_axis = 2
    cands = [_tile_candidates(shape[d], aligns[d]) for d in range(3)]
    best_key, best = None, None
    for t0 in cands[0]:
        for t1 in cands[1]:
            for t2 in cands[2]:
                tiles = (t0, t1, t2)
                out_tiles = (tiles[perm[0]], tiles[perm[1]], tiles[perm[2]])
                fp = max(_vmem_footprint_elems(tiles, sub),
                         _vmem_footprint_elems(out_tiles, sub))
                if fp > max_elems:
                    continue
                total = t0 * t1 * t2
                t_out, t_in = tiles[out_lane_axis], tiles[in_lane_axis]
                key = (min(t_out, out_floor), min(t_in, in_floor), total,
                       t_out, t_in)
                if best_key is None or key > best_key:
                    best_key, best = key, tiles
    return best


def _transpose_kernel(perm, x_ref, o_ref):
    # The permuted input block matches o_ref's block exactly.  Last-axis
    # preserving perms are only a sublane/row shuffle; lane-moving perms lower
    # to XLU (vxpose) panels -- both hide under the HBM DMA for this
    # memory-bound op on v5e/v6e.
    o_ref[...] = jnp.transpose(x_ref[...], axes=perm)


def _pallas_transpose3d(x, perm):
    """jnp.transpose(x, perm) for 3-D x via a tiled, pipelined Pallas kernel."""
    shape = tuple(int(s) for s in x.shape)
    itemsize = jnp.dtype(x.dtype).itemsize
    out_shape = tuple(shape[p] for p in perm)

    # inv[d] = position of input axis d in the output.
    inv = [0, 0, 0]
    for k, p in enumerate(perm):
        inv[p] = k

    # Minimum tiling granularity: (sublane, lane) = (8,128) for 32-bit dtypes,
    # (16,128) for 16-bit, (32,128) for 8-bit; leading axes are unconstrained.
    # Each input axis must satisfy the constraint of its position in BOTH the
    # input block and the permuted output block; a full-extent block is always
    # legal and _tile_candidates always keeps it as a fallback candidate.
    sub = max(8, 32 // max(1, itemsize))
    view_req = (1, sub, 128)
    aligns = tuple(max(view_req[d], view_req[inv[d]]) for d in range(3))

    block_budget, vmem_limit = _vmem_budget_bytes()
    # Packed (<32-bit) data that must cross lanes is often widened to 32 bit
    # for the in-VMEM relayout: budget those blocks at 4 bytes/element.
    budget_itemsize = itemsize if (perm[2] == 2 or itemsize >= 4) else 4
    max_elems = max(1, block_budget // budget_itemsize)

    out_floor = max(128, 4096 // itemsize)   # ~4 KiB output write runs
    in_floor = max(128, 2048 // itemsize)    # ~2 KiB input read runs

    tiles = _pick_tiles(shape, perm, aligns, sub, max_elems,
                        out_floor, in_floor)
    if tiles is None:
        # TODO(synk): misaligned huge dims admit no sub-VMEM block under the
        # (8,128)-or-full rule; fall back to XLA's transpose instead of
        # risking a VMEM-overflow block.
        return jnp.transpose(x, perm)

    # Make sure large arrays get a grid with >= 2 steps so v7x's two
    # TensorCores can split the (fully parallel) grid.
    if (math.prod(tiles) == math.prod(shape)
            and math.prod(shape) * itemsize > _MIN_CORE_SPLIT_BYTES):
        full_fp = max(_vmem_footprint_elems(shape, sub),
                      _vmem_footprint_elems(out_shape, sub))
        half = _pick_tiles(shape, perm, aligns, sub, max(1, full_fp // 2),
                           out_floor, in_floor)
        if half is not None:
            tiles = half

    out_tiles = tuple(tiles[p] for p in perm)
    grid = tuple(out_shape[k] // out_tiles[k] for k in range(3))

    def in_index_map(g0, g1, g2, _inv=tuple(inv)):
        g = (g0, g1, g2)
        return (g[_inv[0]], g[_inv[1]], g[_inv[2]])

    def out_index_map(g0, g1, g2):
        return (g0, g1, g2)

    return pl.pallas_call(
        functools.partial(_transpose_kernel, perm),
        out_shape=jax.ShapeDtypeStruct(out_shape, x.dtype),
        grid=grid,
        in_specs=[pl.BlockSpec(tiles, in_index_map)],
        out_specs=pl.BlockSpec(out_tiles, out_index_map),
        compiler_params=pltpu.CompilerParams(
            # Every grid step writes a distinct output block: fully parallel,
            # so Mosaic may shard the grid across both TensorCores on v7x.
            dimension_semantics=("parallel", "parallel", "parallel"),
            vmem_limit_bytes=vmem_limit,
        ),
        cost_estimate=pl.CostEstimate(
            flops=0,
            transcendentals=0,
            bytes_accessed=2 * math.prod(shape) * itemsize,
        ),
    )(x)


def permute3d(x, dim0, dim1, dim2):
    """Pallas equivalent of Permute3D(dim0, dim1, dim2)(x) for 3-D x."""
    assert x.ndim == 3, "Permute3D operates on 3-D tensors"
    perm = tuple(int(d) % 3 for d in (dim0, dim1, dim2))
    assert sorted(perm) == [0, 1, 2], f"invalid permutation {perm}"

    shape = tuple(int(s) for s in x.shape)
    out_shape = tuple(shape[p] for p in perm)

    # Identity permutation: no data movement at all.
    if perm == (0, 1, 2):
        return x
    # Degenerate / empty tensors.
    if math.prod(shape) == 0:
        return jnp.zeros(out_shape, dtype=x.dtype)
    # If the relative order of all non-unit axes is unchanged, the permutation
    # is a pure (free) reshape -- no HBM round trip through a kernel needed.
    nonunit = [p for p in perm if shape[p] > 1]
    if nonunit == sorted(nonunit):
        return jnp.reshape(x, out_shape)

    d0, d1, d2 = shape
    if perm == (2, 0, 1):
        # y[k,i,j] = x[i,j,k]  ==  transpose of x viewed as (d0*d1, d2).
        # Collapsing in the wrapper keeps the output lane axis d0*d1 wide.
        y = _pallas_transpose3d(jnp.reshape(x, (1, d0 * d1, d2)), (0, 2, 1))
        return jnp.reshape(y, out_shape)
    if perm == (1, 2, 0):
        # y[j,k,i] = x[i,j,k]  ==  transpose of x viewed as (d0, d1*d2).
        y = _pallas_transpose3d(jnp.reshape(x, (1, d0, d1 * d2)), (0, 2, 1))
        return jnp.reshape(y, out_shape)

    # (0,2,1): batched 2-D transpose (batch = unconstrained leading axis)
    # (2,1,0): batched 2-D transpose with the batch axis in the middle
    # (1,0,2): leading-axes swap; the lane axis is preserved (row shuffle only)
    # TODO(synk): (1,0,2) could skip the in-VMEM shuffle entirely with squeezed
    # unit-axis blocks, but that needs a second-minor block dim of 1, which
    # violates the documented (8,128)-or-full block rule; kept on the general
    # path where the shuffle hides under HBM DMA.
    return _pallas_transpose3d(x, perm)


class Permute3D:
    """Thin wrapper mirroring the PyTorch module's interface (no params)."""

    def __init__(self, dim0, dim1, dim2):
        self.dim0 = dim0
        self.dim1 = dim1
        self.dim2 = dim2

    def __call__(self, x):
        return permute3d(x, self.dim0, self.dim1, self.dim2)


if __name__ == "__main__":
    key = jax.random.PRNGKey(0)
    k_small, k_med, k_bf16, k_odd = jax.random.split(key, 4)

    all_perms = [(0, 1, 2), (0, 2, 1), (1, 0, 2), (1, 2, 0), (2, 0, 1), (2, 1, 0)]

    # Small 3-D input -- all six permutations, exact equality.
    x_small = jax.random.normal(k_small, (2, 8, 128), dtype=jnp.float32)
    for p in all_perms:
        y = jax.block_until_ready(Permute3D(*p)(x_small))
        y_ref = jnp.transpose(x_small, p)
        assert y.shape == y_ref.shape, (p, y.shape, y_ref.shape)
        assert y.dtype == y_ref.dtype, (p, y.dtype, y_ref.dtype)
        assert bool(jnp.array_equal(y, y_ref)), f"permute mismatch for {p}"

    # Moderate input that exercises multi-block tiling, the collapsed 2-D
    # transpose paths and the TensorCore-split re-pick (8 MiB f32 array).
    x_med = jax.random.normal(k_med, (16, 256, 512), dtype=jnp.float32)
    for p in all_perms:
        y = jax.block_until_ready(Permute3D(*p)(x_med))
        assert bool(jnp.array_equal(y, jnp.transpose(x_med, p))), (
            f"tiled permute mismatch for {p}")

    # Sub-32-bit dtype (bf16) on aligned dims -- exercises the packed-dtype
    # budget scaling for lane-moving perms.
    x_bf16 = jax.random.normal(k_bf16, (8, 128, 256), dtype=jnp.float32).astype(
        jnp.bfloat16)
    for p in [(0, 2, 1), (1, 0, 2), (2, 1, 0)]:
        y = jax.block_until_ready(Permute3D(*p)(x_bf16))
        assert bool(jnp.array_equal(y, jnp.transpose(x_bf16, p))), (
            f"bf16 permute mismatch for {p}")

    # Awkward (non-multiple-of-128) dims -- full-extent fallback candidates.
    x_odd = jax.random.normal(k_odd, (6, 100, 256), dtype=jnp.float32)
    for p in [(0, 2, 1), (2, 0, 1), (2, 1, 0)]:
        y = jax.block_until_ready(Permute3D(*p)(x_odd))
        assert bool(jnp.array_equal(y, jnp.transpose(x_odd, p))), (
            f"odd-shape permute mismatch for {p}")

    print("KERNEL_OK")
</pallas_src>

<mosaic_0001>
module attributes {stable_mosaic.version = 11 : i64} {
  func.func @_transpose_kernel(%arg0: i32, %arg1: i32, %arg2: i32, %arg3: memref<2x8x128xf32, #tpu.memory_space<vmem>>, %arg4: memref<2x128x8xf32, #tpu.memory_space<vmem>>) attributes {dimension_semantics = [#tpu.dimension_semantics<parallel>, #tpu.dimension_semantics<parallel>, #tpu.dimension_semantics<parallel>], iteration_bounds = array<i64: 1, 1, 1>, scalar_prefetch = 0 : i64, scratch_operands = 0 : i64, tpu.core_type = #tpu.core_type<tc>, window_params = [{transform_indices = @transform_0, window_bounds = array<i64: 2, 8, 128>}, {transform_indices = @transform_1, window_bounds = array<i64: 2, 128, 8>}]} {
    %c0 = arith.constant 0 : index
    %c0_0 = arith.constant 0 : index
    %c0_1 = arith.constant 0 : index
    %0 = vector.load %arg3[%c0, %c0_0, %c0_1] : memref<2x8x128xf32, #tpu.memory_space<vmem>>, vector<2x8x128xf32>
    %1 = tpu.transpose %0, [0, 2, 1] : vector<2x8x128xf32> -> vector<2x128x8xf32>
    %c0_2 = arith.constant 0 : index
    %c0_3 = arith.constant 0 : index
    %c0_4 = arith.constant 0 : index
    %2 = vector.load %arg4[%c0_2, %c0_3, %c0_4] : memref<2x128x8xf32, #tpu.memory_space<vmem>>, vector<2x128x8xf32>
    tpu.vector_store %arg4[%c0_2, %c0_3, %c0_4], %1 {strides = array<i32>} : memref<2x128x8xf32, #tpu.memory_space<vmem>>, vector<2x128x8xf32>,
    return
  }
  func.func @transform_0(%arg0: i32, %arg1: i32, %arg2: i32) -> (i32, i32, i32) {
    %c0_i32 = arith.constant 0 : i32
    return %arg0, %arg2, %arg1 : i32, i32, i32
  }
  func.func @transform_1(%arg0: i32, %arg1: i32, %arg2: i32) -> (i32, i32, i32) {
    %c0_i32 = arith.constant 0 : i32
    return %arg0, %arg1, %arg2 : i32, i32, i32
  }
}

</mosaic_0001>

<llo_original>
// kernel: tpu_custom_call.1
$region0: #{tpu_custom_call.1}
  #allocation0 [shape = 'u32[]', space=smem, size = 0x4, offset = 0x4, fixed_abs, tag = 'smem constant byte address 0x4 - core index']
  #allocation1 [shape = 'u32[72,128]{1,0:T(1,128)}', space=vmem, size = 0x9000, scoped, tag = 'internal scratch']
  %s0 = inlined_call_operand.hbm [shape: f32[2,8,128], index: 0, kind: input, shape index: {}]
  %s1 = inlined_call_operand.vmem [shape: f32[2,128,8], index: 1, kind: output, shape index: {}]
  %s2 = sld [smem:[#allocation0]]
  $region18: #{tpu_custom_call.1} parent=0
    _
  %s4 = ssub.s32 1, %s2
  %s5 = scalar_select 0, %s4, %s2
  $region1: #{tpu_custom_call.1} parent=0
    #allocation2 [shape = 'u8[8192]{0}', space=vmem, size = 0x2000, scoped, tag = 'input window, operand 0, single buffered']
    #allocation3 [shape = 's32[1]{0}', space=sflag, size = 0x4, scoped, tag = 'scoped memory for tpu_custom_call.1']
    %6 = vsyncpa [#allocation3], 0
    // Predicated region
    $region2: #{tpu_custom_call.1} parent=1 // pred_check
      _
    $region3: #{tpu_custom_call.1} parent=1 // pred_check_branch
      %8 = sbr.rel (0) target = $region5
    $region4: #{tpu_custom_call.1} parent=1 // pred_region
      %10 = vsyncadd [#allocation3], 0
      %s11 = sshll.u32 %s0, 4
      %s12 = int_to_ptr.hbm [resolvable:$true] %s11
      %s13 = sshll.u32 [#allocation2], 4
      %s14 = int_to_ptr.vmem [resolvable:$true] %s13
      %19 = dma.hbm_to_vmem [thread:$0]  %s12, 256, %s14, [#allocation3], 128, 128, 8
    $region5: #{tpu_custom_call.1} parent=1 // pred_fallthru
      _
    // Predicated region
    $region6: #{tpu_custom_call.1} parent=1 // pred_check
      _
    $region7: #{tpu_custom_call.1} parent=1 // pred_check_branch
      %21 = sbr.rel (0) target = $region9
    $region8: #{tpu_custom_call.1} parent=1 // pred_region
      %23 = dma.done [#allocation3], 256
    $region9: #{tpu_custom_call.1} parent=1 // pred_fallthru
      _
    %v24 = vld [vmem:[#allocation2] sm:$0xff]
    %v25 = vld [vmem:[#allocation2 + $0x8] sm:$0xff]
    %26 = vxpose.xlu0.b32.start [1/16] %v24, 128
    %27 = vxpose.xlu0.b32.cont [2/16] 0.0, 128
    %28 = vxpose.xlu0.b32.cont [3/16] 0.0, 128
    %29 = vxpose.xlu0.b32.cont [4/16] 0.0, 128
    %30 = vxpose.xlu0.b32.cont [5/16] 0.0, 128
    %31 = vxpose.xlu0.b32.cont [6/16] 0.0, 128
    %32 = vxpose.xlu0.b32.cont [7/16] 0.0, 128
    %33 = vxpose.xlu0.b32.cont [8/16] 0.0, 128
    %34 = vxpose.xlu0.b32.cont [9/16] 0.0, 128
    %35 = vxpose.xlu0.b32.cont [10/16] 0.0, 128
    %36 = vxpose.xlu0.b32.cont [11/16] 0.0, 128
    %37 = vxpose.xlu0.b32.cont [12/16] 0.0, 128
    %38 = vxpose.xlu0.b32.cont [13/16] 0.0, 128
    %39 = vxpose.xlu0.b32.cont [14/16] 0.0, 128
    %40 = vxpose.xlu0.b32.cont [15/16] 0.0, 128
    %41 = vxpose.xlu0.b32.end [16/16] 0.0, 128
    %v42 = vpop.trf.xlu0
    %v43 = vpop.trf.xlu0
    %v44 = vpop.trf.xlu0
    %v45 = vpop.trf.xlu0
    %v46 = vpop.trf.xlu0
    %v47 = vpop.trf.xlu0
    %v48 = vpop.trf.xlu0
    %v49 = vpop.trf.xlu0
    %v50 = vpop.trf.xlu0
    %v51 = vpop.trf.xlu0
    %v52 = vpop.trf.xlu0
    %v53 = vpop.trf.xlu0
    %v54 = vpop.trf.xlu0
    %v55 = vpop.trf.xlu0
    %v56 = vpop.trf.xlu0
    %v57 = vpop.trf.xlu0
    %58 = vxpose.xlu0.b32.start [1/16] %v25, 128
    %59 = vxpose.xlu0.b32.cont [2/16] 0.0, 128
    %60 = vxpose.xlu0.b32.cont [3/16] 0.0, 128
    %61 = vxpose.xlu0.b32.cont [4/16] 0.0, 128
    %62 = vxpose.xlu0.b32.cont [5/16] 0.0, 128
    %63 = vxpose.xlu0.b32.cont [6/16] 0.0, 128
    %64 = vxpose.xlu0.b32.cont [7/16] 0.0, 128
    %65 = vxpose.xlu0.b32.cont [8/16] 0.0, 128
    %66 = vxpose.xlu0.b32.cont [9/16] 0.0, 128
    %67 = vxpose.xlu0.b32.cont [10/16] 0.0, 128
    %68 = vxpose.xlu0.b32.cont [11/16] 0.0, 128
    %69 = vxpose.xlu0.b32.cont [12/16] 0.0, 128
    %70 = vxpose.xlu0.b32.cont [13/16] 0.0, 128
    %71 = vxpose.xlu0.b32.cont [14/16] 0.0, 128
    %72 = vxpose.xlu0.b32.cont [15/16] 0.0, 128
    %73 = vxpose.xlu0.b32.end [16/16] 0.0, 128
    %v74 = vpop.trf.xlu0
    %v75 = vpop.trf.xlu0
    %v76 = vpop.trf.xlu0
    %v77 = vpop.trf.xlu0
    %v78 = vpop.trf.xlu0
    %v79 = vpop.trf.xlu0
    %v80 = vpop.trf.xlu0
    %v81 = vpop.trf.xlu0
    %v82 = vpop.trf.xlu0
    %v83 = vpop.trf.xlu0
    %v84 = vpop.trf.xlu0
    %v85 = vpop.trf.xlu0
    %v86 = vpop.trf.xlu0
    %v87 = vpop.trf.xlu0
    %v88 = vpop.trf.xlu0
    %v89 = vpop.trf.xlu0
    %vm90 = vcmask 64512
    %91 = vst.msk [vmem:[%s1] sm:$0xff] %vm90, %v42
    %92 = vst.msk [vmem:[%s1 + $0x8] sm:$0xff] %vm90, %v43
    %93 = vst.msk [vmem:[%s1 + $0x10] sm:$0xff] %vm90, %v44
    %94 = vst.msk [vmem:[%s1 + $0x18] sm:$0xff] %vm90, %v45
    %95 = vst.msk [vmem:[%s1 + $0x20] sm:$0xff] %vm90, %v46
    %96 = vst.msk [vmem:[%s1 + $0x28] sm:$0xff] %vm90, %v47
    %97 = vst.msk [vmem:[%s1 + $0x30] sm:$0xff] %vm90, %v48
    %98 = vst.msk [vmem:[%s1 + $0x38] sm:$0xff] %vm90, %v49
    %99 = vst.msk [vmem:[%s1 + $0x40] sm:$0xff] %vm90, %v50
    %100 = vst.msk [vmem:[%s1 + $0x48] sm:$0xff] %vm90, %v51
    %101 = vst.msk [vmem:[%s1 + $0x50] sm:$0xff] %vm90, %v52
    %102 = vst.msk [vmem:[%s1 + $0x58] sm:$0xff] %vm90, %v53
    %103 = vst.msk [vmem:[%s1 + $0x60] sm:$0xff] %vm90, %v54
    %104 = vst.msk [vmem:[%s1 + $0x68] sm:$0xff] %vm90, %v55
    %105 = vst.msk [vmem:[%s1 + $0x70] sm:$0xff] %vm90, %v56
    %106 = vst.msk [vmem:[%s1 + $0x78] sm:$0xff] %vm90, %v57
    %107 = vst.msk [vmem:[%s1 + $0x80] sm:$0xff] %vm90, %v74
    %108 = vst.msk [vmem:[%s1 + $0x88] sm:$0xff] %vm90, %v75
    %109 = vst.msk [vmem:[%s1 + $0x90] sm:$0xff] %vm90, %v76
    %110 = vst.msk [vmem:[%s1 + $0x98] sm:$0xff] %vm90, %v77
    %111 = vst.msk [vmem:[%s1 + $0xa0] sm:$0xff] %vm90, %v78
    %112 = vst.msk [vmem:[%s1 + $0xa8] sm:$0xff] %vm90, %v79
    %113 = vst.msk [vmem:[%s1 + $0xb0] sm:$0xff] %vm90, %v80
    %114 = vst.msk [vmem:[%s1 + $0xb8] sm:$0xff] %vm90, %v81
    %115 = vst.msk [vmem:[%s1 + $0xc0] sm:$0xff] %vm90, %v82
    %116 = vst.msk [vmem:[%s1 + $0xc8] sm:$0xff] %vm90, %v83
    %117 = vst.msk [vmem:[%s1 + $0xd0] sm:$0xff] %vm90, %v84
    %118 = vst.msk [vmem:[%s1 + $0xd8] sm:$0xff] %vm90, %v85
    %119 = vst.msk [vmem:[%s1 + $0xe0] sm:$0xff] %vm90, %v86
    %120 = vst.msk [vmem:[%s1 + $0xe8] sm:$0xff] %vm90, %v87
    %121 = vst.msk [vmem:[%s1 + $0xf0] sm:$0xff] %vm90, %v88
    %122 = vst.msk [vmem:[%s1 + $0xf8] sm:$0xff] %vm90, %v89
    // Predicated region
    $region10: #{tpu_custom_call.1} parent=1 // pred_check
      _
    $region11: #{tpu_custom_call.1} parent=1 // pred_check_branch
      %124 = sbr.rel (0) target = $region13
    $region12: #{tpu_custom_call.1} parent=1 // pred_region
      _
    $region13: #{tpu_custom_call.1} parent=1 // pred_fallthru
      _
    // Predicated region
    $region14: #{tpu_custom_call.1} parent=1 // pred_check
      _
    $region15: #{tpu_custom_call.1} parent=1 // pred_check_branch
      %126 = sbr.rel (0) target = $region17
    $region16: #{tpu_custom_call.1} parent=1 // pred_region
      _
    $region17: #{tpu_custom_call.1} parent=1 // pred_fallthru
      _
    %127 = vsyncpa [#allocation3], 1

</llo_original>
